<compile_context>
chip_gen: v7x
topology: tpu7x:2x2x1
jax: 0.10.0
libtpu: 0.0.40
codegen_flags: <defaults>
</compile_context>

<pallas_src>
import jax
import jax.numpy as jnp
from jax.experimental import pallas as pl
from jax.experimental.pallas import tpu as pltpu

LN_EPS = 1e-5


def _round_up(v, m):
    return ((v + m - 1) // m) * m


def _merge_norm_linear_kernel(x_ref, w_ref, b_ref, o_ref):
    # x_ref: (tile_m, 4C) tile of merged tokens.
    # w_ref: (4C, out_pad) = gamma[:, None] * W_reduction  (LN affine folded in)
    # b_ref: (1, out_pad)  = beta @ W_reduction + bias      (f32)
    x = x_ref[...].astype(jnp.float32)
    inv_d = 1.0 / x.shape[-1]
    mean = jnp.sum(x, axis=-1, keepdims=True) * inv_d
    mean_sq = jnp.sum(x * x, axis=-1, keepdims=True) * inv_d
    var = mean_sq - mean * mean
    xn = (x - mean) * jax.lax.rsqrt(var + LN_EPS)
    # Cast activations to the weight dtype (bf16 weights -> bf16 MXU matmul);
    # the weight itself is never re-cast inside the kernel.
    y = jnp.dot(xn.astype(w_ref.dtype), w_ref[...],
                preferred_element_type=jnp.float32)
    o_ref[...] = (y + b_ref[...]).astype(o_ref.dtype)


def mamba_patch_merging(x, H, W, gamma, beta, w_red, b_red, *, tile_m=512):
    """x: (B, N, C) with N == H*W.

    Returns ((B, N//4, output_dim), (H//2, W//2)), matching
    MambaPatchMerging.forward (w_red is the transposed torch weight, i.e.
    shape (4*C, output_dim), so y = norm(xm) @ w_red + b_red).
    """
    B, N, C = x.shape
    assert N == H * W and H % 2 == 0 and W % 2 == 0
    four_c = 4 * C
    out_dim = w_red.shape[1]
    itemsize = jnp.dtype(x.dtype).itemsize

    # --- 2x2 strided gather + concat (pure data movement). ---
    # TODO(synk): express this gather directly via a BlockSpec on the
    # zero-copy (B, H//2, 2, W//2, 2, C) view to guarantee no HBM round-trip
    # even when XLA declines the input fusion.
    xg = x.reshape(B, H, W, C)
    x0 = xg[:, 0::2, 0::2, :]
    x1 = xg[:, 1::2, 0::2, :]
    x2 = xg[:, 0::2, 1::2, :]
    x3 = xg[:, 1::2, 1::2, :]
    xm = jnp.concatenate([x0, x1, x2, x3], axis=-1)      # (B, H/2, W/2, 4C)
    M = (H // 2) * (W // 2)
    rows = B * M
    xm = xm.reshape(rows, four_c)

    # --- fold the LayerNorm affine into the reduction matmul ---
    # norm(x) @ W + b == xhat @ (gamma[:,None] * W) + (beta @ W + b)
    w32 = w_red.astype(jnp.float32)
    w_eff = (gamma.astype(jnp.float32)[:, None] * w32).astype(w_red.dtype)
    b_eff = beta.astype(jnp.float32) @ w32 + b_red.astype(jnp.float32)

    # --- lane-dense output: pad out_dim up to a multiple of 128 ---
    out_pad = _round_up(max(out_dim, 128), 128)
    if out_pad != out_dim:
        w_eff = jnp.pad(w_eff, ((0, 0), (0, out_pad - out_dim)))
        b_eff = jnp.pad(b_eff, (0, out_pad - out_dim))
    b_eff = b_eff.reshape(1, out_pad)

    # --- row tiling: no divisibility requirement, pad rows instead ---
    tile_m = max(8, (min(tile_m, _round_up(rows, 8)) // 8) * 8)

    def vmem_needed(tm):
        in_b = tm * four_c * itemsize
        out_b = tm * out_pad * itemsize
        w_b = four_c * out_pad * jnp.dtype(w_eff.dtype).itemsize
        bias_b = out_pad * 4
        return 2 * (in_b + out_b + w_b + bias_b)       # double-buffered

    # keep the double-buffered working set inside a conservative budget that
    # fits every generation's scoped VMEM (v5e 16 MiB default, v7x 64 MiB
    # physical) once vmem_limit_bytes is raised below.
    vmem_budget = 24 << 20
    while tile_m > 8 and vmem_needed(tile_m) > vmem_budget:
        tile_m = max(8, ((tile_m // 2) // 8) * 8)

    rows_padded = _round_up(rows, tile_m)
    if rows_padded != rows:
        xm = jnp.pad(xm, ((0, rows_padded - rows), (0, 0)))

    vmem_limit = int(min(64 << 20, max(16 << 20, vmem_needed(tile_m) + (8 << 20))))
    grid = rows_padded // tile_m

    out = pl.pallas_call(
        _merge_norm_linear_kernel,
        out_shape=jax.ShapeDtypeStruct((rows_padded, out_pad), x.dtype),
        grid_spec=pltpu.PrefetchScalarGridSpec(
            num_scalar_prefetch=0,
            grid=(grid,),
            in_specs=[
                pl.BlockSpec((tile_m, four_c), lambda i: (i, 0)),
                pl.BlockSpec((four_c, out_pad), lambda i: (0, 0)),
                pl.BlockSpec((1, out_pad), lambda i: (0, 0)),
            ],
            out_specs=pl.BlockSpec((tile_m, out_pad), lambda i: (i, 0)),
        ),
        compiler_params=pltpu.CompilerParams(
            dimension_semantics=("parallel",),
            vmem_limit_bytes=vmem_limit,
            allow_input_fusion=[True, False, False],
        ),
    )(xm, w_eff, b_eff)

    out = out[:rows, :out_dim].reshape(B, M, out_dim)
    return out, (H // 2, W // 2)


def reference(x, H, W, gamma, beta, w_red, b_red):
    B, N, C = x.shape
    xg = x.reshape(B, H, W, C)
    x0 = xg[:, 0::2, 0::2, :]
    x1 = xg[:, 1::2, 0::2, :]
    x2 = xg[:, 0::2, 1::2, :]
    x3 = xg[:, 1::2, 1::2, :]
    xm = jnp.concatenate([x0, x1, x2, x3], axis=-1).reshape(B, -1, 4 * C)
    mean = jnp.mean(xm, axis=-1, keepdims=True)
    var = jnp.mean((xm - mean) ** 2, axis=-1, keepdims=True)
    xn = (xm - mean) / jnp.sqrt(var + LN_EPS) * gamma + beta
    return xn @ w_red + b_red


if __name__ == "__main__":
    # small shapes: B=2, C=4 (input_dim), H=W=16 -> N=256, output_dim=8
    B, C, H, W = 2, 4, 16, 16
    input_dim, output_dim = C, 8
    N = H * W

    key = jax.random.PRNGKey(0)
    kx, kg, kb, kw, kbb = jax.random.split(key, 5)

    x = jax.random.normal(kx, (B, N, C), dtype=jnp.float32)

    # deterministic synthetic parameters (no checkpoint)
    gamma = 1.0 + 0.01 * jax.random.normal(kg, (4 * input_dim,), dtype=jnp.float32)
    beta = 0.01 * jax.random.normal(kb, (4 * input_dim,), dtype=jnp.float32)
    # PyTorch Linear weight is (out, in); y = x @ W.T + b  ->  pass W.T directly
    w_red = 0.1 * jax.random.normal(kw, (4 * input_dim, output_dim), dtype=jnp.float32)
    b_red = 0.1 * jax.random.normal(kbb, (output_dim,), dtype=jnp.float32)

    (y, (h2, w2)) = mamba_patch_merging(x, H, W, gamma, beta, w_red, b_red)
    y = jax.block_until_ready(y)

    y_ref = reference(x, H, W, gamma, beta, w_red, b_red)
    assert y.shape == (B, N // 4, output_dim)
    assert (h2, w2) == (H // 2, W // 2)
    assert jnp.allclose(y, y_ref, atol=1e-4, rtol=1e-4), (
        float(jnp.max(jnp.abs(y - y_ref))))

    print("KERNEL_OK")
</pallas_src>

<mosaic_0001>
module attributes {stable_mosaic.version = 11 : i64} {
  func.func @_merge_norm_linear_kernel(%arg0: i32, %arg1: memref<128x16xf32, #tpu.memory_space<vmem>>, %arg2: memref<16x128xf32, #tpu.memory_space<vmem>>, %arg3: memref<1x128xf32, #tpu.memory_space<vmem>>, %arg4: memref<128x128xf32, #tpu.memory_space<vmem>>) attributes {dimension_semantics = [#tpu.dimension_semantics<parallel>], iteration_bounds = array<i64: 1>, scalar_prefetch = 0 : i64, scratch_operands = 0 : i64, tpu.core_type = #tpu.core_type<tc>, window_params = [{transform_indices = @transform_0, window_bounds = array<i64: 128, 16>}, {pipeline_mode = #tpu.pipeline_mode<synchronous>, transform_indices = @transform_1, window_bounds = array<i64: 16, 128>}, {pipeline_mode = #tpu.pipeline_mode<synchronous>, transform_indices = @transform_2, window_bounds = array<i64: 1, 128>}, {transform_indices = @transform_3, window_bounds = array<i64: 128, 128>}]} {
    %c0 = arith.constant 0 : index
    %c0_0 = arith.constant 0 : index
    %0 = vector.load %arg1[%c0, %c0_0] : memref<128x16xf32, #tpu.memory_space<vmem>>, vector<128x16xf32>
    %cst = arith.constant dense<0.000000e+00> : vector<128xf32>
    %1 = vector.multi_reduction <add>, %0, %cst [1] : vector<128x16xf32> to vector<128xf32>
    %2 = vector.shape_cast %1 : vector<128xf32> to vector<128x1xf32>
    %cst_1 = arith.constant 6.250000e-02 : f32
    %3 = vector.broadcast %cst_1 : f32 to vector<128x1xf32>
    %4 = arith.mulf %2, %3 : vector<128x1xf32>
    %5 = arith.mulf %0, %0 : vector<128x16xf32>
    %cst_2 = arith.constant dense<0.000000e+00> : vector<128xf32>
    %6 = vector.multi_reduction <add>, %5, %cst_2 [1] : vector<128x16xf32> to vector<128xf32>
    %7 = vector.shape_cast %6 : vector<128xf32> to vector<128x1xf32>
    %cst_3 = arith.constant 6.250000e-02 : f32
    %8 = vector.broadcast %cst_3 : f32 to vector<128x1xf32>
    %9 = arith.mulf %7, %8 : vector<128x1xf32>
    %10 = arith.mulf %4, %4 : vector<128x1xf32>
    %11 = arith.subf %9, %10 : vector<128x1xf32>
    %12 = vector.broadcast %4 : vector<128x1xf32> to vector<128x16xf32>
    %13 = arith.subf %0, %12 : vector<128x16xf32>
    %cst_4 = arith.constant 9.99999974E-6 : f32
    %14 = vector.broadcast %cst_4 : f32 to vector<128x1xf32>
    %15 = arith.addf %11, %14 : vector<128x1xf32>
    %16 = math.rsqrt %15 : vector<128x1xf32>
    %17 = vector.broadcast %16 : vector<128x1xf32> to vector<128x16xf32>
    %18 = arith.mulf %13, %17 : vector<128x16xf32>
    %c0_5 = arith.constant 0 : index
    %c0_6 = arith.constant 0 : index
    %19 = vector.load %arg2[%c0_5, %c0_6] : memref<16x128xf32, #tpu.memory_space<vmem>>, vector<16x128xf32>
    %cst_7 = arith.constant dense<0.000000e+00> : vector<128x128xf32>
    %20 = tpu.matmul %18, %19, %cst_7 {dimension_numbers = #tpu.dot_dimension_numbers<[1], [0], [0], [1], [0, 0, 1, 1], [], []>} : vector<128x16xf32>, vector<16x128xf32>, vector<128x128xf32> -> vector<128x128xf32>
    %c0_8 = arith.constant 0 : index
    %c0_9 = arith.constant 0 : index
    %21 = vector.load %arg3[%c0_8, %c0_9] : memref<1x128xf32, #tpu.memory_space<vmem>>, vector<1x128xf32>
    %22 = vector.broadcast %21 : vector<1x128xf32> to vector<128x128xf32>
    %23 = arith.addf %20, %22 : vector<128x128xf32>
    %c0_10 = arith.constant 0 : index
    %c0_11 = arith.constant 0 : index
    %24 = vector.load %arg4[%c0_10, %c0_11] : memref<128x128xf32, #tpu.memory_space<vmem>>, vector<128x128xf32>
    tpu.vector_store %arg4[%c0_10, %c0_11], %23 {strides = array<i32>} : memref<128x128xf32, #tpu.memory_space<vmem>>, vector<128x128xf32>,
    return
  }
  func.func @transform_0(%arg0: i32) -> (i32, i32) {
    %c0_i32 = arith.constant 0 : i32
    %c0_i32_0 = arith.constant 0 : i32
    return %arg0, %c0_i32 : i32, i32
  }
  func.func @transform_1(%arg0: i32) -> (i32, i32) {
    %c0_i32 = arith.constant 0 : i32
    %c0_i32_0 = arith.constant 0 : i32
    %c0_i32_1 = arith.constant 0 : i32
    return %c0_i32, %c0_i32_0 : i32, i32
  }
  func.func @transform_2(%arg0: i32) -> (i32, i32) {
    %c0_i32 = arith.constant 0 : i32
    %c0_i32_0 = arith.constant 0 : i32
    %c0_i32_1 = arith.constant 0 : i32
    return %c0_i32, %c0_i32_0 : i32, i32
  }
  func.func @transform_3(%arg0: i32) -> (i32, i32) {
    %c0_i32 = arith.constant 0 : i32
    %c0_i32_0 = arith.constant 0 : i32
    return %arg0, %c0_i32 : i32, i32
  }
}

</mosaic_0001>

<llo_original>
// kernel: tpu_custom_call.1
$region0: #{tpu_custom_call.1}
  #allocation0 [shape = 'u32[]', space=smem, size = 0x4, offset = 0x4, fixed_abs, tag = 'smem constant byte address 0x4 - core index']
  #allocation1 [shape = 'u32[144,128]{1,0:T(1,128)}', space=vmem, size = 0x12000, scoped, tag = 'internal scratch']
  %s0 = inlined_call_operand.vmem [shape: f32[128,16], index: 0, kind: input, shape index: {}]
  %s1 = inlined_call_operand.vmem [shape: f32[16,128], index: 1, kind: input, shape index: {}]
  %s2 = inlined_call_operand.vmem [shape: f32[1,128], index: 2, kind: input, shape index: {}]
  %s3 = inlined_call_operand.hbm [shape: f32[128,128], index: 3, kind: output, shape index: {}]
  %s4 = sld [smem:[#allocation0]]
  $region22: #{tpu_custom_call.1} parent=0
    _
  %s6 = ssub.s32 1, %s4
  %s7 = scalar_select 0, %s6, %s4
  $region1: #{tpu_custom_call.1} parent=0
    #allocation2 [shape = 'u8[65536]{0}', space=vmem, size = 0x10000, scoped, tag = 'output window, operand 0, single buffered']
    #allocation3 [shape = 's32[1]{0}', space=sflag, size = 0x4, scoped, tag = 'scoped memory for tpu_custom_call.1']
    %8 = vsyncpa [#allocation3], 0
    // Predicated region
    $region2: #{tpu_custom_call.1} parent=1 // pred_check
      _
    $region3: #{tpu_custom_call.1} parent=1 // pred_check_branch
      %10 = sbr.rel (0) target = $region5
    $region4: #{tpu_custom_call.1} parent=1 // pred_region
      _
    $region5: #{tpu_custom_call.1} parent=1 // pred_fallthru
      _
    // Predicated region
    $region6: #{tpu_custom_call.1} parent=1 // pred_check
      _
    $region7: #{tpu_custom_call.1} parent=1 // pred_check_branch
      %12 = sbr.rel (0) target = $region9
    $region8: #{tpu_custom_call.1} parent=1 // pred_region
      _
    $region9: #{tpu_custom_call.1} parent=1 // pred_fallthru
      _
    // Predicated region
    $region10: #{tpu_custom_call.1} parent=1 // pred_check
      _
    $region11: #{tpu_custom_call.1} parent=1 // pred_check_branch
      %14 = sbr.rel (0) target = $region13
    $region12: #{tpu_custom_call.1} parent=1 // pred_region
      _
    $region13: #{tpu_custom_call.1} parent=1 // pred_fallthru
      _
    %v15 = vld [vmem:[%s0] sm:$0xff]
    %v16 = vld [vmem:[%s0 + $0x8] sm:$0xff]
    %v17 = vld [vmem:[%s0 + $0x10] sm:$0xff]
    %v18 = vld [vmem:[%s0 + $0x18] sm:$0xff]
    %v19 = vld [vmem:[%s0 + $0x20] sm:$0xff]
    %v20 = vld [vmem:[%s0 + $0x28] sm:$0xff]
    %v21 = vld [vmem:[%s0 + $0x30] sm:$0xff]
    %v22 = vld [vmem:[%s0 + $0x38] sm:$0xff]
    %v23 = vld [vmem:[%s0 + $0x40] sm:$0xff]
    %v24 = vld [vmem:[%s0 + $0x48] sm:$0xff]
    %v25 = vld [vmem:[%s0 + $0x50] sm:$0xff]
    %v26 = vld [vmem:[%s0 + $0x58] sm:$0xff]
    %v27 = vld [vmem:[%s0 + $0x60] sm:$0xff]
    %v28 = vld [vmem:[%s0 + $0x68] sm:$0xff]
    %v29 = vld [vmem:[%s0 + $0x70] sm:$0xff]
    %v30 = vld [vmem:[%s0 + $0x78] sm:$0xff]
    %vm31 = vcmask 130048
    %v32 = vsel %vm31, %v15, 0.0
    %33 = vadd.xlane.f32.xlu0 %v32
    %v34 = vpop.xlane.xlu0 %33
    %v35 = vsel %vm31, %v16, 0.0
    %36 = vadd.xlane.f32.xlu0 %v35
    %v37 = vpop.xlane.xlu0 %36
    %v38 = vsel %vm31, %v17, 0.0
    %39 = vadd.xlane.f32.xlu0 %v38
    %v40 = vpop.xlane.xlu0 %39
    %v41 = vsel %vm31, %v18, 0.0
    %42 = vadd.xlane.f32.xlu0 %v41
    %v43 = vpop.xlane.xlu0 %42
    %v44 = vsel %vm31, %v19, 0.0
    %45 = vadd.xlane.f32.xlu0 %v44
    %v46 = vpop.xlane.xlu0 %45
    %v47 = vsel %vm31, %v20, 0.0
    %48 = vadd.xlane.f32.xlu0 %v47
    %v49 = vpop.xlane.xlu0 %48
    %v50 = vsel %vm31, %v21, 0.0
    %51 = vadd.xlane.f32.xlu0 %v50
    %v52 = vpop.xlane.xlu0 %51
    %v53 = vsel %vm31, %v22, 0.0
    %54 = vadd.xlane.f32.xlu0 %v53
    %v55 = vpop.xlane.xlu0 %54
    %v56 = vsel %vm31, %v23, 0.0
    %57 = vadd.xlane.f32.xlu0 %v56
    %v58 = vpop.xlane.xlu0 %57
    %v59 = vsel %vm31, %v24, 0.0
    %60 = vadd.xlane.f32.xlu0 %v59
    %v61 = vpop.xlane.xlu0 %60
    %v62 = vsel %vm31, %v25, 0.0
    %63 = vadd.xlane.f32.xlu0 %v62
    %v64 = vpop.xlane.xlu0 %63
    %v65 = vsel %vm31, %v26, 0.0
    %66 = vadd.xlane.f32.xlu0 %v65
    %v67 = vpop.xlane.xlu0 %66
    %v68 = vsel %vm31, %v27, 0.0
    %69 = vadd.xlane.f32.xlu0 %v68
    %v70 = vpop.xlane.xlu0 %69
    %v71 = vsel %vm31, %v28, 0.0
    %72 = vadd.xlane.f32.xlu0 %v71
    %v73 = vpop.xlane.xlu0 %72
    %v74 = vsel %vm31, %v29, 0.0
    %75 = vadd.xlane.f32.xlu0 %v74
    %v76 = vpop.xlane.xlu0 %75
    %v77 = vsel %vm31, %v30, 0.0
    %78 = vadd.xlane.f32.xlu0 %v77
    %v79 = vpop.xlane.xlu0 %78
    %v80 = vmul.f32 %v34, 0.0625
    %v81 = vmul.f32 %v37, 0.0625
    %v82 = vmul.f32 %v40, 0.0625
    %v83 = vmul.f32 %v43, 0.0625
    %v84 = vmul.f32 %v46, 0.0625
    %v85 = vmul.f32 %v49, 0.0625
    %v86 = vmul.f32 %v52, 0.0625
    %v87 = vmul.f32 %v55, 0.0625
    %v88 = vmul.f32 %v58, 0.0625
    %v89 = vmul.f32 %v61, 0.0625
    %v90 = vmul.f32 %v64, 0.0625
    %v91 = vmul.f32 %v67, 0.0625
    %v92 = vmul.f32 %v70, 0.0625
    %v93 = vmul.f32 %v73, 0.0625
    %v94 = vmul.f32 %v76, 0.0625
    %v95 = vmul.f32 %v79, 0.0625
    %v96 = vmul.f32 %v15, %v15
    %v97 = vmul.f32 %v16, %v16
    %v98 = vmul.f32 %v17, %v17
    %v99 = vmul.f32 %v18, %v18
    %v100 = vmul.f32 %v19, %v19
    %v101 = vmul.f32 %v20, %v20
    %v102 = vmul.f32 %v21, %v21
    %v103 = vmul.f32 %v22, %v22
    %v104 = vmul.f32 %v23, %v23
    %v105 = vmul.f32 %v24, %v24
    %v106 = vmul.f32 %v25, %v25
    %v107 = vmul.f32 %v26, %v26
    %v108 = vmul.f32 %v27, %v27
    %v109 = vmul.f32 %v28, %v28
    %v110 = vmul.f32 %v29, %v29
    %v111 = vmul.f32 %v30, %v30
    %v112 = vsel %vm31, %v96, 0.0
    %113 = vadd.xlane.f32.xlu0 %v112
    %v114 = vpop.xlane.xlu0 %113
    %v115 = vsel %vm31, %v97, 0.0
    %116 = vadd.xlane.f32.xlu0 %v115
    %v117 = vpop.xlane.xlu0 %116
    %v118 = vsel %vm31, %v98, 0.0
    %119 = vadd.xlane.f32.xlu0 %v118
    %v120 = vpop.xlane.xlu0 %119
    %v121 = vsel %vm31, %v99, 0.0
    %122 = vadd.xlane.f32.xlu0 %v121
    %v123 = vpop.xlane.xlu0 %122
    %v124 = vsel %vm31, %v100, 0.0
    %125 = vadd.xlane.f32.xlu0 %v124
    %v126 = vpop.xlane.xlu0 %125
    %v127 = vsel %vm31, %v101, 0.0
    %128 = vadd.xlane.f32.xlu0 %v127
    %v129 = vpop.xlane.xlu0 %128
    %v130 = vsel %vm31, %v102, 0.0
    %131 = vadd.xlane.f32.xlu0 %v130
    %v132 = vpop.xlane.xlu0 %131
    %v133 = vsel %vm31, %v103, 0.0
    %134 = vadd.xlane.f32.xlu0 %v133
    %v135 = vpop.xlane.xlu0 %134
    %v136 = vsel %vm31, %v104, 0.0
    %137 = vadd.xlane.f32.xlu0 %v136
    %v138 = vpop.xlane.xlu0 %137
    %v139 = vsel %vm31, %v105, 0.0
    %140 = vadd.xlane.f32.xlu0 %v139
    %v141 = vpop.xlane.xlu0 %140
    %v142 = vsel %vm31, %v106, 0.0
    %143 = vadd.xlane.f32.xlu0 %v142
    %v144 = vpop.xlane.xlu0 %143
    %v145 = vsel %vm31, %v107, 0.0
    %146 = vadd.xlane.f32.xlu0 %v145
    %v147 = vpop.xlane.xlu0 %146
    %v148 = vsel %vm31, %v108, 0.0
    %149 = vadd.xlane.f32.xlu0 %v148
    %v150 = vpop.xlane.xlu0 %149
    %v151 = vsel %vm31, %v109, 0.0
    %152 = vadd.xlane.f32.xlu0 %v151
    %v153 = vpop.xlane.xlu0 %152
    %v154 = vsel %vm31, %v110, 0.0
    %155 = vadd.xlane.f32.xlu0 %v154
    %v156 = vpop.xlane.xlu0 %155
    %v157 = vsel %vm31, %v111, 0.0
    %158 = vadd.xlane.f32.xlu0 %v157
    %v159 = vpop.xlane.xlu0 %158
    %v160 = vmul.f32 %v114, 0.0625
    %v161 = vmul.f32 %v117, 0.0625
    %v162 = vmul.f32 %v120, 0.0625
    %v163 = vmul.f32 %v123, 0.0625
    %v164 = vmul.f32 %v126, 0.0625
    %v165 = vmul.f32 %v129, 0.0625
    %v166 = vmul.f32 %v132, 0.0625
    %v167 = vmul.f32 %v135, 0.0625
    %v168 = vmul.f32 %v138, 0.0625
    %v169 = vmul.f32 %v141, 0.0625
    %v170 = vmul.f32 %v144, 0.0625
    %v171 = vmul.f32 %v147, 0.0625
    %v172 = vmul.f32 %v150, 0.0625
    %v173 = vmul.f32 %v153, 0.0625
    %v174 = vmul.f32 %v156, 0.0625
    %v175 = vmul.f32 %v159, 0.0625
    %v176 = vmul.f32 %v80, %v80
    %v177 = vmul.f32 %v81, %v81
    %v178 = vmul.f32 %v82, %v82
    %v179 = vmul.f32 %v83, %v83
    %v180 = vmul.f32 %v84, %v84
    %v181 = vmul.f32 %v85, %v85
    %v182 = vmul.f32 %v86, %v86
    %v183 = vmul.f32 %v87, %v87
    %v184 = vmul.f32 %v88, %v88
    %v185 = vmul.f32 %v89, %v89
    %v186 = vmul.f32 %v90, %v90
    %v187 = vmul.f32 %v91, %v91
    %v188 = vmul.f32 %v92, %v92
    %v189 = vmul.f32 %v93, %v93
    %v190 = vmul.f32 %v94, %v94
    %v191 = vmul.f32 %v95, %v95
    %v192 = vsub.f32 %v160, %v176
    %v193 = vsub.f32 %v161, %v177
    %v194 = vsub.f32 %v162, %v178
    %v195 = vsub.f32 %v163, %v179
    %v196 = vsub.f32 %v164, %v180
    %v197 = vsub.f32 %v165, %v181
    %v198 = vsub.f32 %v166, %v182
    %v199 = vsub.f32 %v167, %v183
    %v200 = vsub.f32 %v168, %v184
    %v201 = vsub.f32 %v169, %v185
    %v202 = vsub.f32 %v170, %v186
    %v203 = vsub.f32 %v171, %v187
    %v204 = vsub.f32 %v172, %v188
    %v205 = vsub.f32 %v173, %v189
    %v206 = vsub.f32 %v174, %v190
    %v207 = vsub.f32 %v175, %v191
    %v208 = vsub.f32 %v15, %v80
    %v209 = vsub.f32 %v16, %v81
    %v210 = vsub.f32 %v17, %v82
    %v211 = vsub.f32 %v18, %v83
    %v212 = vsub.f32 %v19, %v84
    %v213 = vsub.f32 %v20, %v85
    %v214 = vsub.f32 %v21, %v86
    %v215 = vsub.f32 %v22, %v87
    %v216 = vsub.f32 %v23, %v88
    %v217 = vsub.f32 %v24, %v89
    %v218 = vsub.f32 %v25, %v90
    %v219 = vsub.f32 %v26, %v91
    %v220 = vsub.f32 %v27, %v92
    %v221 = vsub.f32 %v28, %v93
    %v222 = vsub.f32 %v29, %v94
    %v223 = vsub.f32 %v30, %v95
    %v224 = vadd.f32 %v192, 1e-05
    %v225 = vadd.f32 %v193, 1e-05
    %v226 = vadd.f32 %v194, 1e-05
    %v227 = vadd.f32 %v195, 1e-05
    %v228 = vadd.f32 %v196, 1e-05
    %v229 = vadd.f32 %v197, 1e-05
    %v230 = vadd.f32 %v198, 1e-05
    %v231 = vadd.f32 %v199, 1e-05
    %v232 = vadd.f32 %v200, 1e-05
    %v233 = vadd.f32 %v201, 1e-05
    %v234 = vadd.f32 %v202, 1e-05
    %v235 = vadd.f32 %v203, 1e-05
    %v236 = vadd.f32 %v204, 1e-05
    %v237 = vadd.f32 %v205, 1e-05
    %v238 = vadd.f32 %v206, 1e-05
    %v239 = vadd.f32 %v207, 1e-05
    %v240 = vrsqrt.pop %v224
    %v241 = vrsqrt.pop %v225
    %v242 = vrsqrt.pop %v226
    %v243 = vrsqrt.pop %v227
    %v244 = vrsqrt.pop %v228
    %v245 = vrsqrt.pop %v229
    %v246 = vrsqrt.pop %v230
    %v247 = vrsqrt.pop %v231
    %v248 = vrsqrt.pop %v232
    %v249 = vrsqrt.pop %v233
    %v250 = vrsqrt.pop %v234
    %v251 = vrsqrt.pop %v235
    %v252 = vrsqrt.pop %v236
    %v253 = vrsqrt.pop %v237
    %v254 = vrsqrt.pop %v238
    %v255 = vrsqrt.pop %v239
    %v256 = vmul.f32 %v208, %v240
    %v257 = vmul.f32 %v209, %v241
    %v258 = vmul.f32 %v210, %v242
    %v259 = vmul.f32 %v211, %v243
    %v260 = vmul.f32 %v212, %v244
    %v261 = vmul.f32 %v213, %v245
    %v262 = vmul.f32 %v214, %v246
    %v263 = vmul.f32 %v215, %v247
    %v264 = vmul.f32 %v216, %v248
    %v265 = vmul.f32 %v217, %v249
    %v266 = vmul.f32 %v218, %v250
    %v267 = vmul.f32 %v219, %v251
    %v268 = vmul.f32 %v220, %v252
    %v269 = vmul.f32 %v221, %v253
    %v270 = vmul.f32 %v222, %v254
    %v271 = vmul.f32 %v223, %v255
    %v272 = vld [vmem:[%s1] sm:$0xff]
    %v273 = vld [vmem:[%s1 + $0x8] sm:$0xff]
    %v274 = vld [vmem:[%s2] sm:$0x1]
    %v276 = vlaneseq
    %v277 = vshrl.u32 %v276, 7
    %v278 = vsub.s32 0, %v277
    %v279 = vrot.slane %v274, %v278
    %v282 = vsel %vm31, %v256, 0
    %v285 = vsel %vm31, %v257, 0
    %v288 = vsel %vm31, %v258, 0
    %v291 = vsel %vm31, %v259, 0
    %v294 = vsel %vm31, %v260, 0
    %v297 = vsel %vm31, %v261, 0
    %v300 = vsel %vm31, %v262, 0
    %v303 = vsel %vm31, %v263, 0
    %v306 = vsel %vm31, %v264, 0
    %v309 = vsel %vm31, %v265, 0
    %v312 = vsel %vm31, %v266, 0
    %v315 = vsel %vm31, %v267, 0
    %v318 = vsel %vm31, %v268, 0
    %v321 = vsel %vm31, %v269, 0
    %v324 = vsel %vm31, %v270, 0
    %v327 = vsel %vm31, %v271, 0
    %329 = vmatprep.subr.mxu0 0.0
    %330 = vmatpush1.msra.mxu0 %v272
    %331 = vmatprep.subr.mxu0 0.0
    %332 = vmatpush1.msra.mxu0 %v273
    %333 = vmatprep.subr.mxu0 0.0
    %334 = vmatpush1.msra.mxu0 0.0
    %335 = vmatprep.subr.mxu0 0.0
    %336 = vmatpush1.msra.mxu0 0.0
    %337 = vmatprep.subr.mxu0 0.0
    %338 = vmatpush1.msra.mxu0 0.0
    %339 = vmatprep.subr.mxu0 0.0
    %340 = vmatpush1.msra.mxu0 0.0
    %341 = vmatprep.subr.mxu0 0.0
    %342 = vmatpush1.msra.mxu0 0.0
    %343 = vmatprep.subr.mxu0 0.0
    %344 = vmatpush1.msra.mxu0 0.0
    %345 = vmatprep.subr.mxu0 0.0
    %346 = vmatpush1.msra.mxu0 0.0
    %347 = vmatprep.subr.mxu0 0.0
    %348 = vmatpush1.msra.mxu0 0.0
    %349 = vmatprep.subr.mxu0 0.0
    %350 = vmatpush1.msra.mxu0 0.0
    %351 = vmatprep.subr.mxu0 0.0
    %352 = vmatpush1.msra.mxu0 0.0
    %353 = vmatprep.subr.mxu0 0.0
    %354 = vmatpush1.msra.mxu0 0.0
    %355 = vmatprep.subr.mxu0 0.0
    %356 = vmatpush1.msra.mxu0 0.0
    %357 = vmatprep.subr.mxu0 0.0
    %358 = vmatpush1.msra.mxu0 0.0
    %359 = vmatprep.subr.mxu0 0.0
    %360 = vmatpush1.msra.mxu0 0.0
    %361 = vmatprep.subr.mxu0 0.0
    %362 = vmatpush1.msra.mxu0 0.0
    %363 = vmatprep.subr.mxu0 0.0
    %364 = vmatpush1.msra.mxu0 0.0
    %365 = vmatprep.subr.mxu0 0.0
    %366 = vmatpush1.msra.mxu0 0.0
    %367 = vmatprep.subr.mxu0 0.0
    %368 = vmatpush1.msra.mxu0 0.0
    %369 = vmatprep.subr.mxu0 0.0
    %370 = vmatpush1.msra.mxu0 0.0
    %371 = vmatprep.subr.mxu0 0.0
    %372 = vmatpush1.msra.mxu0 0.0
    %373 = vmatprep.subr.mxu0 0.0
    %374 = vmatpush1.msra.mxu0 0.0
    %375 = vmatprep.subr.mxu0 0.0
    %376 = vmatpush1.msra.mxu0 0.0
    %377 = vmatprep.subr.mxu0 0.0
    %378 = vmatpush1.msra.mxu0 0.0
    %379 = vmatprep.subr.mxu0 0.0
    %380 = vmatpush1.msra.mxu0 0.0
    %381 = vmatprep.subr.mxu0 0.0
    %382 = vmatpush1.msra.mxu0 0.0
    %383 = vmatprep.subr.mxu0 0.0
    %384 = vmatpush1.msra.mxu0 0.0
    %385 = vmatprep.subr.mxu0 0.0
    %386 = vmatpush1.msra.mxu0 0.0
    %387 = vmatprep.subr.mxu0 0.0
    %388 = vmatpush1.msra.mxu0 0.0
    %389 = vmatprep.subr.mxu0 0.0
    %390 = vmatpush1.msra.mxu0 0.0
    %391 = vmatprep.subr.mxu0 0.0
    %392 = vmatpush1.msra.mxu0 0.0
    %393 = vmatprep.mubr.f32.mxu0 0.0
    %394 = vmatmul.mubr.f32.gmra.mrb[0].mxu0 %v282
    %v395 = vpop.f32.mrb[0].mxu0
    %v396 = vadd.f32 %v279, %v395
    %v397 = vpop.f32.mrb[0].mxu0
    %398 = vmatprep.mubr.f32.mxu0 0.0
    %399 = vmatmul.mubr.f32.gmra.mrb[0].mxu0 %v285
    %v400 = vpop.f32.mrb[0].mxu0
    %v401 = vadd.f32 %v279, %v400
    %v402 = vpop.f32.mrb[0].mxu0
    %403 = vmatprep.mubr.f32.mxu0 0.0
    %404 = vmatmul.mubr.f32.gmra.mrb[0].mxu0 %v288
    %v405 = vpop.f32.mrb[0].mxu0
    %v406 = vadd.f32 %v279, %v405
    %v407 = vpop.f32.mrb[0].mxu0
    %408 = vmatprep.mubr.f32.mxu0 0.0
    %409 = vmatmul.mubr.f32.gmra.mrb[0].mxu0 %v291
    %v410 = vpop.f32.mrb[0].mxu0
    %v411 = vadd.f32 %v279, %v410
    %v412 = vpop.f32.mrb[0].mxu0
    %413 = vmatprep.mubr.f32.mxu0 0.0
    %414 = vmatmul.mubr.f32.gmra.mrb[0].mxu0 %v294
    %v415 = vpop.f32.mrb[0].mxu0
    %v416 = vadd.f32 %v279, %v415
    %v417 = vpop.f32.mrb[0].mxu0
    %418 = vmatprep.mubr.f32.mxu0 0.0
    %419 = vmatmul.mubr.f32.gmra.mrb[0].mxu0 %v297
    %v420 = vpop.f32.mrb[0].mxu0
    %v421 = vadd.f32 %v279, %v420
    %v422 = vpop.f32.mrb[0].mxu0
    %423 = vmatprep.mubr.f32.mxu0 0.0
    %424 = vmatmul.mubr.f32.gmra.mrb[0].mxu0 %v300
    %v425 = vpop.f32.mrb[0].mxu0
    %v426 = vadd.f32 %v279, %v425
    %v427 = vpop.f32.mrb[0].mxu0
    %428 = vmatprep.mubr.f32.mxu0 0.0
    %429 = vmatmul.mubr.f32.gmra.mrb[0].mxu0 %v303
    %v430 = vpop.f32.mrb[0].mxu0
    %v431 = vadd.f32 %v279, %v430
    %v432 = vpop.f32.mrb[0].mxu0
    %433 = vmatprep.mubr.f32.mxu0 0.0
    %434 = vmatmul.mubr.f32.gmra.mrb[0].mxu0 %v306
    %v435 = vpop.f32.mrb[0].mxu0
    %v436 = vadd.f32 %v279, %v435
    %v437 = vpop.f32.mrb[0].mxu0
    %438 = vmatprep.mubr.f32.mxu0 0.0
    %439 = vmatmul.mubr.f32.gmra.mrb[0].mxu0 %v309
    %v440 = vpop.f32.mrb[0].mxu0
    %v441 = vadd.f32 %v279, %v440
    %v442 = vpop.f32.mrb[0].mxu0
    %443 = vmatprep.mubr.f32.mxu0 0.0
    %444 = vmatmul.mubr.f32.gmra.mrb[0].mxu0 %v312
    %v445 = vpop.f32.mrb[0].mxu0
    %v446 = vadd.f32 %v279, %v445
    %v447 = vpop.f32.mrb[0].mxu0
    %448 = vmatprep.mubr.f32.mxu0 0.0
    %449 = vmatmul.mubr.f32.gmra.mrb[0].mxu0 %v315
    %v450 = vpop.f32.mrb[0].mxu0
    %v451 = vadd.f32 %v279, %v450
    %v452 = vpop.f32.mrb[0].mxu0
    %453 = vmatprep.mubr.f32.mxu0 0.0
    %454 = vmatmul.mubr.f32.gmra.mrb[0].mxu0 %v318
    %v455 = vpop.f32.mrb[0].mxu0
    %v456 = vadd.f32 %v279, %v455
    %v457 = vpop.f32.mrb[0].mxu0
    %458 = vmatprep.mubr.f32.mxu0 0.0
    %459 = vmatmul.mubr.f32.gmra.mrb[0].mxu0 %v321
    %v460 = vpop.f32.mrb[0].mxu0
    %v461 = vadd.f32 %v279, %v460
    %v462 = vpop.f32.mrb[0].mxu0
    %463 = vmatprep.mubr.f32.mxu0 0.0
    %464 = vmatmul.mubr.f32.gmra.mrb[0].mxu0 %v324
    %v465 = vpop.f32.mrb[0].mxu0
    %v466 = vadd.f32 %v279, %v465
    %v467 = vpop.f32.mrb[0].mxu0
    %468 = vmatprep.mubr.f32.mxu0 0.0
    %469 = vmatmul.mubr.f32.gmra.mrb[0].mxu0 %v327
    %v470 = vpop.f32.mrb[0].mxu0
    %v471 = vadd.f32 %v279, %v470
    %v472 = vpop.f32.mrb[0].mxu0
    %473 = vdwg.mxu0
    %474 = vst [vmem:[#allocation2] sm:$0xff] %v396
    %475 = vst [vmem:[#allocation2 + $0x8] sm:$0xff] %v401
    %476 = vst [vmem:[#allocation2 + $0x10] sm:$0xff] %v406
    %477 = vst [vmem:[#allocation2 + $0x18] sm:$0xff] %v411
    %478 = vst [vmem:[#allocation2 + $0x20] sm:$0xff] %v416
    %479 = vst [vmem:[#allocation2 + $0x28] sm:$0xff] %v421
    %480 = vst [vmem:[#allocation2 + $0x30] sm:$0xff] %v426
    %481 = vst [vmem:[#allocation2 + $0x38] sm:$0xff] %v431
    %482 = vst [vmem:[#allocation2 + $0x40] sm:$0xff] %v436
    %483 = vst [vmem:[#allocation2 + $0x48] sm:$0xff] %v441
    %484 = vst [vmem:[#allocation2 + $0x50] sm:$0xff] %v446
    %485 = vst [vmem:[#allocation2 + $0x58] sm:$0xff] %v451
    %486 = vst [vmem:[#allocation2 + $0x60] sm:$0xff] %v456
    %487 = vst [vmem:[#allocation2 + $0x68] sm:$0xff] %v461
    %488 = vst [vmem:[#allocation2 + $0x70] sm:$0xff] %v466
    %489 = vst [vmem:[#allocation2 + $0x78] sm:$0xff] %v471
    // Predicated region
    $region14: #{tpu_custom_call.1} parent=1 // pred_check
      _
    $region15: #{tpu_custom_call.1} parent=1 // pred_check_branch
      %491 = sbr.rel (0) target = $region17
    $region16: #{tpu_custom_call.1} parent=1 // pred_region
      %s493 = ssub.s32 2048, 2048
      %494 = vsyncadd [#allocation3], %s493
      %s495 = sshll.u32 [#allocation2], 4
      %s496 = int_to_ptr.vmem [resolvable:$true] %s495
      %501 = dma.vmem_to_hbm [thread:$0]  %s496, 2048, %s3, [#allocation3], 128, 128, 8
    $region17: #{tpu_custom_call.1} parent=1 // pred_fallthru
      _
    // Predicated region
    $region18: #{tpu_custom_call.1} parent=1 // pred_check
      _
    $region19: #{tpu_custom_call.1} parent=1 // pred_check_branch
      %503 = sbr.rel (0) target = $region21
    $region20: #{tpu_custom_call.1} parent=1 // pred_region
      %504 = dma.done [#allocation3], 2048
    $region21: #{tpu_custom_call.1} parent=1 // pred_fallthru
      _
    %505 = vsyncpa [#allocation3], 1

</llo_original>
